<compile_context>
chip_gen: v7x
topology: tpu7x:2x2x1
jax: 0.10.0
libtpu: 0.0.40
codegen_flags: <defaults>
</compile_context>

<pallas_src>
import functools

import numpy as np
import jax
import jax.numpy as jnp
from jax import lax
from jax.experimental import pallas as pl
from jax.experimental.pallas import tpu as pltpu


def _int_pow(x, n):
    """x ** n for a small positive integer n via repeated multiplies (VPU only)."""
    result = None
    base = x
    while n > 0:
        if n & 1:
            result = base if result is None else result * base
        n >>= 1
        if n:
            base = base * base
    return result


def _gemp_kernel(p_ref, invp_ref, x_ref, o_ref, acc_ref, *,
                 eps, inv_hw, chunk, n_chunks, int_p):
    # p_ref    : (Ct, 1)         per-channel exponent (resident across k steps)
    # invp_ref : (Ct, 1)         precomputed 1/p (resident)
    # x_ref    : (1, Ct, Tw)     NCHW block: channels on sublanes, HW on lanes
    # o_ref    : (1, Ct, 1)      pooled output for this (batch, channel-tile)
    # acc_ref  : (Ct, chunk) f32 per-lane running sums of clamp(x)**p
    k = pl.program_id(2)

    @pl.when(k == 0)
    def _init():
        acc_ref[...] = jnp.zeros_like(acc_ref)

    ct = acc_ref.shape[0]

    if int_p is None:
        # Hoisted out of the (unrolled) chunk loop: JAX does not CSE
        # broadcast_in_dim, so re-materializing this per chunk would be wasted.
        p_b = jnp.broadcast_to(p_ref[...], (ct, chunk)).astype(jnp.float32)

    def _one_chunk(start):
        xs = x_ref[0, :, pl.ds(start, chunk)].astype(jnp.float32)
        xs = jnp.maximum(xs, eps)
        if int_p is not None:
            xp = _int_pow(xs, int_p)          # VPU-only, no EUP transcendentals
        else:
            xp = jnp.power(xs, p_b)           # log/exp on the EUP
        acc_ref[...] += xp                    # plain VPU add; no XLU reduce here

    if n_chunks == 1:
        _one_chunk(0)
    else:
        def _body(i, carry):
            start = pl.multiple_of(i * chunk, chunk)
            _one_chunk(start)
            return carry
        lax.fori_loop(0, n_chunks, _body, 0, unroll=True)

    @pl.when(k == pl.num_programs(2) - 1)
    def _finalize():
        # Single XLU cross-lane reduce at the very end.
        s = jnp.sum(acc_ref[...], axis=-1, keepdims=True)        # (Ct, 1)
        m = s * inv_hw                                           # spatial mean
        o_ref[...] = jnp.power(m, invp_ref[...])[None].astype(o_ref.dtype)


def _pick_channel_tile(B, C, HW):
    """Divisor of C, multiple of 8 when possible; keeps >=2 parallel blocks."""
    cands = [d for d in range(8, C + 1, 8) if C % d == 0]
    if not cands:
        return C                      # small / odd C -> full-channel tile
    # For small / non-128 HW the DMA rows are short: cover more rows per step.
    cap = 512 if HW % 128 != 0 else 128
    fits = [d for d in cands if d <= cap]
    ct = max(fits) if fits else min(cands)
    if B * (C // ct) < 2:             # v7x megacore: want >= 2 parallel blocks
        smaller = [d for d in cands if C // d >= 2]
        if smaller:
            ct = max(smaller)
    return ct


def _pick_spatial_tile(hw, ct, itemsize, max_bytes):
    """Largest multiple of 128 dividing hw whose block fits the byte budget."""
    if hw % 128 != 0:
        return hw                     # full extent (equals the array dim)
    best = 128
    t = 128
    while t <= hw:
        if hw % t == 0 and t * ct * itemsize <= max_bytes:
            best = t
        t += 128
    return best


def _pick_chunk(tw):
    for c in (512, 256, 128):
        if tw % c == 0:
            return c
    return tw


def _vmem_config():
    """(vmem_limit_bytes, per-block byte budget), generation-aware."""
    phys = None
    try:
        info = pltpu.get_tpu_info()
        phys = getattr(info, "vmem_capacity_bytes", None)
    except Exception:
        phys = None
    if phys is None:
        phys = 64 * 1024 * 1024                      # conservative fallback
    if phys <= 64 * 1024 * 1024:                     # v7x-class: 64 MiB / TC
        return 44 * 1024 * 1024, 6 * 1024 * 1024
    return 64 * 1024 * 1024, 8 * 1024 * 1024         # v5e / v6e: 128 MiB


def _uniform_int_p(p):
    """Small positive int if p is concretely known, uniform and integer; else None."""
    try:
        ph = np.asarray(p)
    except Exception:
        return None                                  # traced -> no specialization
    if ph.size == 0:
        return None
    v = float(ph.reshape(-1)[0])
    if not bool(np.all(ph == v)):
        return None
    iv = int(round(v))
    if 1 <= iv <= 16 and abs(v - iv) < 1e-12:
        return iv
    return None


def generalized_mean_pooling_many_p(x_nchw, p, eps=1e-6):
    """x_nchw: (B, C, H, W), p: (C,) float -> (B, C, 1, 1)."""
    B, C, H, W = x_nchw.shape
    HW = H * W

    x = x_nchw.reshape(B, C, HW)                     # metadata-only reshape
    p_f32 = p.astype(jnp.float32)
    p_col = p_f32.reshape(C, 1)
    invp_col = (1.0 / p_f32).reshape(C, 1)

    vmem_limit, block_budget = _vmem_config()
    Ct = _pick_channel_tile(B, C, HW)
    Tw = _pick_spatial_tile(HW, Ct, jnp.dtype(x_nchw.dtype).itemsize, block_budget)
    chunk = _pick_chunk(Tw)
    n_chunks = Tw // chunk
    int_p = _uniform_int_p(p)

    grid = (B, C // Ct, HW // Tw)

    kernel = functools.partial(
        _gemp_kernel, eps=float(eps), inv_hw=1.0 / float(HW),
        chunk=chunk, n_chunks=n_chunks, int_p=int_p)

    out = pl.pallas_call(
        kernel,
        out_shape=jax.ShapeDtypeStruct((B, C, 1), x_nchw.dtype),
        grid_spec=pltpu.PrefetchScalarGridSpec(
            num_scalar_prefetch=0,
            grid=grid,
            in_specs=[
                pl.BlockSpec((Ct, 1), lambda b, c, k: (c, 0)),         # p (resident)
                pl.BlockSpec((Ct, 1), lambda b, c, k: (c, 0)),         # 1/p (resident)
                pl.BlockSpec((1, Ct, Tw), lambda b, c, k: (b, c, k)),  # x tile
            ],
            out_specs=pl.BlockSpec((1, Ct, 1), lambda b, c, k: (b, c, 0)),
            scratch_shapes=[pltpu.VMEM((Ct, chunk), jnp.float32)],
        ),
        compiler_params=pltpu.CompilerParams(
            dimension_semantics=("parallel", "parallel", "arbitrary"),
            vmem_limit_bytes=vmem_limit,
        ),
    )(p_col, invp_col, x)

    return out.reshape(B, C, 1, 1)


def _reference(x, p, eps):
    xf = x.astype(jnp.float32)
    pf = p.astype(jnp.float32)[None, :, None, None]
    xr = jnp.maximum(xf, eps) ** pf
    m = jnp.mean(xr, axis=(2, 3), keepdims=True)
    return (m ** (1.0 / pf)).astype(x.dtype)


if __name__ == "__main__":
    key = jax.random.PRNGKey(0)
    eps = 1e-6
    k1, k2, k3, k4 = jax.random.split(key, 4)
    checks = []

    # 1) Uniform p = 3.0 (module init: nn.Parameter(ones * norm)) -> integer VPU path.
    x1 = jax.random.normal(k1, (2, 4, 16, 16), dtype=jnp.float32)
    p1 = jnp.ones((4,), dtype=jnp.float32) * 3.0
    y1 = generalized_mean_pooling_many_p(x1, p1, eps=eps)
    checks.append((y1, _reference(x1, p1, eps), 1e-4, 1e-5))

    # 2) Per-channel (non-uniform) p -> general EUP power path.
    x2 = jax.random.normal(k2, (2, 4, 16, 16), dtype=jnp.float32)
    p2 = jnp.array([1.0, 2.5, 3.0, 4.2], dtype=jnp.float32)
    y2 = generalized_mean_pooling_many_p(x2, p2, eps=eps)
    checks.append((y2, _reference(x2, p2, eps), 1e-4, 1e-5))

    # 3) Production-style small 7x7 feature map (HW=49, not a multiple of 128).
    x3 = jax.random.normal(k3, (2, 8, 7, 7), dtype=jnp.float32)
    p3 = jnp.linspace(1.5, 4.0, 8).astype(jnp.float32)
    y3 = generalized_mean_pooling_many_p(x3, p3, eps=eps)
    checks.append((y3, _reference(x3, p3, eps), 1e-4, 1e-5))

    # 4) bf16 input + larger HW (exercises the lane-chunked unrolled inner loop).
    x4 = jax.random.normal(k4, (2, 8, 32, 32), dtype=jnp.bfloat16)
    p4 = jnp.linspace(2.0, 4.0, 8).astype(jnp.float32)
    y4 = generalized_mean_pooling_many_p(x4, p4, eps=eps)
    checks.append((y4, _reference(x4, p4, eps), 2e-2, 2e-2))

    for y, ref, rtol, atol in checks:
        jax.block_until_ready(y)
        assert y.shape == ref.shape
        assert jnp.allclose(y.astype(jnp.float32), ref.astype(jnp.float32),
                            rtol=rtol, atol=atol)

    print("KERNEL_OK")
</pallas_src>

<mosaic_0001>
module attributes {stable_mosaic.version = 11 : i64} {
  func.func @_gemp_kernel(%arg0: i32, %arg1: i32, %arg2: i32, %arg3: memref<4x1xf32, #tpu.memory_space<vmem>>, %arg4: memref<4x1xf32, #tpu.memory_space<vmem>>, %arg5: memref<1x4x256xf32, #tpu.memory_space<vmem>>, %arg6: memref<1x4x1xf32, #tpu.memory_space<vmem>>, %arg7: memref<4x256xf32, #tpu.memory_space<vmem>>) attributes {dimension_semantics = [#tpu.dimension_semantics<parallel>, #tpu.dimension_semantics<parallel>, #tpu.dimension_semantics<arbitrary>], iteration_bounds = array<i64: 2, 1, 1>, scalar_prefetch = 0 : i64, scratch_operands = 1 : i64, tpu.core_type = #tpu.core_type<tc>, window_params = [{transform_indices = @transform_0, window_bounds = array<i64: 4, 1>}, {transform_indices = @transform_1, window_bounds = array<i64: 4, 1>}, {transform_indices = @transform_2, window_bounds = array<i64: 1, 4, 256>}, {transform_indices = @transform_3, window_bounds = array<i64: 1, 4, 1>}]} {
    %c0_i32 = arith.constant 0 : i32
    %0 = arith.cmpi eq, %arg2, %c0_i32 : i32
    %1 = arith.extui %0 : i1 to i32
    %c0_i32_0 = arith.constant 0 : i32
    %2 = arith.cmpi ne, %1, %c0_i32_0 : i32
    scf.if %2 {
      %cst_9 = arith.constant 0.000000e+00 : f32
      %15 = vector.broadcast %cst_9 : f32 to vector<4x256xf32>
      %c0_10 = arith.constant 0 : index
      %c0_11 = arith.constant 0 : index
      %16 = vector.load %arg7[%c0_10, %c0_11] : memref<4x256xf32, #tpu.memory_space<vmem>>, vector<4x256xf32>
      tpu.vector_store %arg7[%c0_10, %c0_11], %15 {strides = array<i32>} : memref<4x256xf32, #tpu.memory_space<vmem>>, vector<4x256xf32>,
    } else {
    }
    %c0 = arith.constant 0 : index
    %c0_1 = arith.constant 0 : index
    %c0_2 = arith.constant 0 : index
    %3 = vector.load %arg5[%c0, %c0_1, %c0_2] : memref<1x4x256xf32, #tpu.memory_space<vmem>>, vector<1x4x256xf32>
    %4 = vector.shape_cast %3 : vector<1x4x256xf32> to vector<4x256xf32>
    %cst = arith.constant 9.99999997E-7 : f32
    %5 = vector.broadcast %cst : f32 to vector<4x256xf32>
    %6 = arith.maximumf %4, %5 : vector<4x256xf32>
    %7 = arith.mulf %6, %6 : vector<4x256xf32>
    %8 = arith.mulf %6, %7 : vector<4x256xf32>
    %c0_3 = arith.constant 0 : index
    %c0_4 = arith.constant 0 : index
    %9 = vector.load %arg7[%c0_3, %c0_4] : memref<4x256xf32, #tpu.memory_space<vmem>>, vector<4x256xf32>
    %10 = arith.addf %9, %8 : vector<4x256xf32>
    %c0_5 = arith.constant 0 : index
    %c0_6 = arith.constant 0 : index
    %11 = vector.load %arg7[%c0_5, %c0_6] : memref<4x256xf32, #tpu.memory_space<vmem>>, vector<4x256xf32>
    tpu.vector_store %arg7[%c0_5, %c0_6], %10 {strides = array<i32>} : memref<4x256xf32, #tpu.memory_space<vmem>>, vector<4x256xf32>,
    %c0_i32_7 = arith.constant 0 : i32
    %12 = arith.cmpi eq, %arg2, %c0_i32_7 : i32
    %13 = arith.extui %12 : i1 to i32
    %c0_i32_8 = arith.constant 0 : i32
    %14 = arith.cmpi ne, %13, %c0_i32_8 : i32
    scf.if %14 {
      %c0_9 = arith.constant 0 : index
      %c0_10 = arith.constant 0 : index
      %15 = vector.load %arg7[%c0_9, %c0_10] : memref<4x256xf32, #tpu.memory_space<vmem>>, vector<4x256xf32>
      %cst_11 = arith.constant dense<0.000000e+00> : vector<4xf32>
      %16 = vector.multi_reduction <add>, %15, %cst_11 [1] : vector<4x256xf32> to vector<4xf32>
      %17 = vector.shape_cast %16 : vector<4xf32> to vector<4x1xf32>
      %cst_12 = arith.constant 3.906250e-03 : f32
      %18 = vector.broadcast %cst_12 : f32 to vector<4x1xf32>
      %19 = arith.mulf %17, %18 : vector<4x1xf32>
      %c0_13 = arith.constant 0 : index
      %c0_14 = arith.constant 0 : index
      %20 = vector.load %arg4[%c0_13, %c0_14] : memref<4x1xf32, #tpu.memory_space<vmem>>, vector<4x1xf32>
      %21 = math.powf %19, %20 : vector<4x1xf32>
      %22 = vector.shape_cast %21 : vector<4x1xf32> to vector<1x4x1xf32>
      %c0_15 = arith.constant 0 : index
      %c0_16 = arith.constant 0 : index
      %c0_17 = arith.constant 0 : index
      %23 = vector.load %arg6[%c0_15, %c0_16, %c0_17] : memref<1x4x1xf32, #tpu.memory_space<vmem>>, vector<1x4x1xf32>
      tpu.vector_store %arg6[%c0_15, %c0_16, %c0_17], %22 {strides = array<i32>} : memref<1x4x1xf32, #tpu.memory_space<vmem>>, vector<1x4x1xf32>,
    } else {
    }
    return
  }
  func.func @transform_0(%arg0: i32, %arg1: i32, %arg2: i32) -> (i32, i32) {
    %c0_i32 = arith.constant 0 : i32
    %c0_i32_0 = arith.constant 0 : i32
    return %arg1, %c0_i32 : i32, i32
  }
  func.func @transform_1(%arg0: i32, %arg1: i32, %arg2: i32) -> (i32, i32) {
    %c0_i32 = arith.constant 0 : i32
    %c0_i32_0 = arith.constant 0 : i32
    return %arg1, %c0_i32 : i32, i32
  }
  func.func @transform_2(%arg0: i32, %arg1: i32, %arg2: i32) -> (i32, i32, i32) {
    %c0_i32 = arith.constant 0 : i32
    return %arg0, %arg1, %arg2 : i32, i32, i32
  }
  func.func @transform_3(%arg0: i32, %arg1: i32, %arg2: i32) -> (i32, i32, i32) {
    %c0_i32 = arith.constant 0 : i32
    %c0_i32_0 = arith.constant 0 : i32
    return %arg0, %arg1, %c0_i32 : i32, i32, i32
  }
}

</mosaic_0001>

<llo_original>
// kernel: tpu_custom_call.1
$region0: #{tpu_custom_call.1}
  #allocation0 [shape = 'u32[]', space=smem, size = 0x4, offset = 0x4, fixed_abs, tag = 'smem constant byte address 0x4 - core index']
  #allocation1 [shape = 'u32[144,128]{1,0:T(1,128)}', space=vmem, size = 0x12000, scoped, tag = 'internal scratch']
  #allocation2 [shape = 'f32[4,256]{1,0:T(4,128)}', space=vmem, size = 0x1000, scoped, tag = 'scratch operand']
  %s0 = inlined_call_operand.vmem [shape: f32[4,1], index: 0, kind: input, shape index: {}]
  %s1 = inlined_call_operand.vmem [shape: f32[4,1], index: 1, kind: input, shape index: {}]
  %s2 = inlined_call_operand.vmem [shape: f32[2,4,256], index: 2, kind: input, shape index: {}]
  %s3 = inlined_call_operand.vmem [shape: f32[2,4,1], index: 3, kind: output, shape index: {}]
  %s4 = sld [smem:[#allocation0]]
  $region53: #{tpu_custom_call.1} parent=0
    _
  %s6 = ssub.s32 1, %s4
  %s7 = scalar_select 0, %s6, %s4
  loop: start=0, step=1, limit=4
  $region2: #{tpu_custom_call.1} parent=0 // loop_pre_header
    _
  $region3: #{tpu_custom_call.1} parent=0 // loop_header
    %s9 = sphi 0, %s13
    %p10 = scmp.ge.s32.totalorder %s9, 4
    %s16 = sphi 0, %s35
    %s17 = sphi 0, %s31
    %s18 = sphi 0, %s27
    %s19 = sphi 0, %s16
    %s20 = sphi 0, %s17
    %s21 = sphi 0, %s18
    %s22 = sphi 0, %s19
    %s23 = sphi 0, %s20
    %s24 = sphi 0, %s21
    %s38 = sphi 0, %s40
    %s41 = sphi 0, %s38
    %s42 = sphi 0, %s41
    %s58 = sphi 0, %s42
    %s64 = sphi 0, %s66
    %s67 = sphi 0, %s64
    %s68 = sphi 0, %s67
    %s84 = sphi 0, %s68
    %s94 = sphi 0, %s96
    %s97 = sphi 0, %s94
    %s98 = sphi 0, %s97
    %s114 = sphi 0, %s98
    %s122 = sphi 0, %s124
    %s125 = sphi 0, %s122
    %s126 = sphi 0, %s125
    %s142 = sphi 0, %s126
  $region4: #{tpu_custom_call.1} parent=0 // loop_header_branch
    %12 = sbr.rel (%p10) target = $region8
  $region5: #{tpu_custom_call.1} parent=0 // loop_body
    %s14 = ssub.s32 %s9, 1
    %s15 = ssub.s32 %s9, 2
    %s25 = sadd.s32 1, %s18
    %p26 = scmp.ge.s32.totalorder %s25, 1
    %s27 = scalar_select %p26, 0, %s25
    %s28 = sadd.s32 1, %s17
    %s29 = scalar_select %p26, %s28, %s17
    %p30 = scmp.ge.s32.totalorder %s29, 1
    %s31 = scalar_select %p30, 0, %s29
    %s32 = sadd.s32 1, %s16
    %s33 = scalar_select %p30, %s32, %s16
    %p34 = scmp.ge.s32.totalorder %s33, 2
    %s35 = scalar_select %p34, 0, %s33
    %s36 = ssub.s32 %s17, %s31
    %p37 = scmp.eq.s32.totalorder %s36, 0
    %s39 = sadd.s32 %s38, 1
    %s40 = scalar_select %p37, %s38, %s39
    %p43 = pneg %p37
    %p44 = scmp.eq.s32.totalorder %s9, 1
    %p45 = por %p43, %p44
    %p46 = scmp.ne.s32.totalorder %s38, %s41
    %p47 = scmp.eq.s32.totalorder %s9, 0
    %p48 = por %p46, %p47
    %p49 = scmp.ne.s32.totalorder %s38, %s41
    %p50 = scmp.eq.s32.totalorder %s14, 1
    %p51 = por %p49, %p50
    %p52 = scmp.ne.s32.totalorder %s41, %s42
    %p53 = scmp.eq.s32.totalorder %s14, 0
    %p54 = por %p52, %p53
    %p55 = scmp.ne.s32.totalorder %s41, %s42
    %p56 = scmp.eq.s32.totalorder %s15, 1
    %p57 = por %p55, %p56
    %p59 = scmp.ne.s32.totalorder %s42, %s58
    %p60 = scmp.eq.s32.totalorder %s15, 0
    %p61 = por %p59, %p60
    %s62 = ssub.s32 %s17, %s31
    %p63 = scmp.eq.s32.totalorder %s62, 0
    %s65 = sadd.s32 %s64, 1
    %s66 = scalar_select %p63, %s64, %s65
    %p69 = pneg %p63
    %p70 = scmp.eq.s32.totalorder %s9, 1
    %p71 = por %p69, %p70
    %p72 = scmp.ne.s32.totalorder %s64, %s67
    %p73 = scmp.eq.s32.totalorder %s9, 0
    %p74 = por %p72, %p73
    %p75 = scmp.ne.s32.totalorder %s64, %s67
    %p76 = scmp.eq.s32.totalorder %s14, 1
    %p77 = por %p75, %p76
    %p78 = scmp.ne.s32.totalorder %s67, %s68
    %p79 = scmp.eq.s32.totalorder %s14, 0
    %p80 = por %p78, %p79
    %p81 = scmp.ne.s32.totalorder %s67, %s68
    %p82 = scmp.eq.s32.totalorder %s15, 1
    %p83 = por %p81, %p82
    %p85 = scmp.ne.s32.totalorder %s68, %s84
    %p86 = scmp.eq.s32.totalorder %s15, 0
    %p87 = por %p85, %p86
    %s88 = ssub.s32 %s16, %s35
    %s89 = ssub.s32 %s17, %s31
    %s90 = sor.u32 %s88, %s89
    %s91 = ssub.s32 %s18, %s27
    %s92 = sor.u32 %s90, %s91
    %p93 = scmp.eq.s32.totalorder %s92, 0
    %s95 = sadd.s32 %s94, 1
    %s96 = scalar_select %p93, %s94, %s95
    %p99 = pneg %p93
    %p100 = scmp.eq.s32.totalorder %s9, 1
    %p101 = por %p99, %p100
    %p102 = scmp.ne.s32.totalorder %s94, %s97
    %p103 = scmp.eq.s32.totalorder %s9, 0
    %p104 = por %p102, %p103
    %p105 = scmp.ne.s32.totalorder %s94, %s97
    %p106 = scmp.eq.s32.totalorder %s14, 1
    %p107 = por %p105, %p106
    %p108 = scmp.ne.s32.totalorder %s97, %s98
    %p109 = scmp.eq.s32.totalorder %s14, 0
    %p110 = por %p108, %p109
    %p111 = scmp.ne.s32.totalorder %s97, %s98
    %p112 = scmp.eq.s32.totalorder %s15, 1
    %p113 = por %p111, %p112
    %p115 = scmp.ne.s32.totalorder %s98, %s114
    %p116 = scmp.eq.s32.totalorder %s15, 0
    %p117 = por %p115, %p116
    %s118 = ssub.s32 %s16, %s35
    %s119 = ssub.s32 %s17, %s31
    %s120 = sor.u32 %s118, %s119
    %p121 = scmp.eq.s32.totalorder %s120, 0
    %s123 = sadd.s32 %s122, 1
    %s124 = scalar_select %p121, %s122, %s123
    %p127 = pneg %p121
    %p128 = scmp.eq.s32.totalorder %s9, 1
    %p129 = por %p127, %p128
    %p130 = scmp.ne.s32.totalorder %s122, %s125
    %p131 = scmp.eq.s32.totalorder %s9, 0
    %p132 = por %p130, %p131
    %p133 = scmp.ne.s32.totalorder %s122, %s125
    %p134 = scmp.eq.s32.totalorder %s14, 1
    %p135 = por %p133, %p134
    %p136 = scmp.ne.s32.totalorder %s125, %s126
    %p137 = scmp.eq.s32.totalorder %s14, 0
    %p138 = por %p136, %p137
    %p139 = scmp.ne.s32.totalorder %s125, %s126
    %p140 = scmp.eq.s32.totalorder %s15, 1
    %p141 = por %p139, %p140
    %p143 = scmp.ne.s32.totalorder %s126, %s142
    %p144 = scmp.eq.s32.totalorder %s15, 0
    %p145 = por %p143, %p144
    %p146 = scmp.le.s32.totalorder 1, %s9
    %p147 = scmp.lt.s32.totalorder %s9, 3
    %p148 = pnand %p146, %p147
    %p149 = pneg %p148
    // Predicated region
    $region9: #{tpu_custom_call.1} parent=5 // pred_check
      _
    $region10: #{tpu_custom_call.1} parent=5 // pred_check_branch
      %151 = sbr.rel (%p148) target = $region12
    $region11: #{tpu_custom_call.1} parent=5 // pred_region
      %s152 = ssub.s32 %s9, 1
      // Predicated region
      $region13: #{tpu_custom_call.1} parent=11 // pred_check
        %p153 = pneg %p54
      $region14: #{tpu_custom_call.1} parent=11 // pred_check_branch
        %155 = sbr.rel (%p153) target = $region16
      $region15: #{tpu_custom_call.1} parent=11 // pred_region
        %p156 = scmp.lt.s32.totalorder %s20, 0
        %s157 = scalar_select %p156, %s20, 0
        %s158 = smul.addr %s157, 4
        %s159 = scalar_lea.vmem %s0, %s158
      $region16: #{tpu_custom_call.1} parent=11 // pred_fallthru
        _
      // Predicated region
      $region17: #{tpu_custom_call.1} parent=11 // pred_check
        %p160 = pneg %p80
      $region18: #{tpu_custom_call.1} parent=11 // pred_check_branch
        %162 = sbr.rel (%p160) target = $region20
      $region19: #{tpu_custom_call.1} parent=11 // pred_region
        %p163 = scmp.lt.s32.totalorder %s20, 0
        %s164 = scalar_select %p163, %s20, 0
        %s165 = smul.addr %s164, 4
        %s166 = scalar_lea.vmem %s1, %s165
      $region20: #{tpu_custom_call.1} parent=11 // pred_fallthru
        _
    $region12: #{tpu_custom_call.1} parent=5 // pred_fallthru
      _
    %p167 = scmp.lt.s32.totalorder %s9, 2
    // Predicated region
    $region21: #{tpu_custom_call.1} parent=5 // pred_check
      %p168 = pneg %p167
    $region22: #{tpu_custom_call.1} parent=5 // pred_check_branch
      %170 = sbr.rel (%p168) target = $region24
    $region23: #{tpu_custom_call.1} parent=5 // pred_region
      // Predicated region
      $region25: #{tpu_custom_call.1} parent=23 // pred_check
        %p171 = pneg %p104
      $region26: #{tpu_custom_call.1} parent=23 // pred_check_branch
        %173 = sbr.rel (%p171) target = $region28
      $region27: #{tpu_custom_call.1} parent=23 // pred_region
        %s174 = smul.u32 2, %s18
        %p175 = scmp.lt.s32.totalorder %s16, 1
        %s176 = scalar_select %p175, %s16, 1
        %p177 = scmp.lt.s32.totalorder %s17, 0
        %s178 = scalar_select %p177, %s17, 0
        %p179 = scmp.lt.s32.totalorder %s174, 1
        %s180 = scalar_select %p179, %s174, 1
        %s181 = smul.addr %s178, 2
        %s182 = sadd.s32 %s180, %s181
        %s183 = smul.addr %s176, 2
        %s184 = sadd.s32 %s182, %s183
        %s185 = smul.addr %s184, 4
        %s186 = scalar_lea.vmem %s2, %s185
        %s187 = smul.u32 2, %s18
      $region28: #{tpu_custom_call.1} parent=23 // pred_fallthru
        _
    $region24: #{tpu_custom_call.1} parent=5 // pred_fallthru
      _
    %p188 = scmp.le.s32.totalorder 1, %s9
    %p189 = scmp.lt.s32.totalorder %s9, 3
    %p190 = pnand %p188, %p189
    %p191 = pneg %p190
    // Predicated region
    $region29: #{tpu_custom_call.1} parent=5 // pred_check
      _
    $region30: #{tpu_custom_call.1} parent=5 // pred_check_branch
      %193 = sbr.rel (%p190) target = $region32
    $region31: #{tpu_custom_call.1} parent=5 // pred_region
      %s194 = ssub.s32 %s9, 1
      %p195 = scmp.lt.s32.totalorder %s20, 0
      %s196 = scalar_select %p195, %s20, 0
      %s197 = smul.addr %s196, 4
      %s198 = scalar_lea.vmem %s0, %s197
      %p199 = pneg %p54
      %p200 = pneg %p51
      %p201 = scmp.lt.s32.totalorder %s20, 0
      %s202 = scalar_select %p201, %s20, 0
      %s203 = smul.addr %s202, 4
      %s204 = scalar_lea.vmem %s1, %s203
      %p205 = pneg %p80
      %p206 = pneg %p77
      %s207 = smul.u32 2, %s21
      %p208 = scmp.lt.s32.totalorder %s19, 1
      %s209 = scalar_select %p208, %s19, 1
      %p210 = scmp.lt.s32.totalorder %s20, 0
      %s211 = scalar_select %p210, %s20, 0
      %p212 = scmp.lt.s32.totalorder %s207, 1
      %s213 = scalar_select %p212, %s207, 1
      %s214 = smul.addr %s211, 2
      %s215 = sadd.s32 %s213, %s214
      %s216 = smul.addr %s209, 2
      %s217 = sadd.s32 %s215, %s216
      %s218 = smul.addr %s217, 4
      %s219 = scalar_lea.vmem %s2, %s218
      %p220 = pneg %p110
      %p221 = pneg %p107
      %p222 = pneg %p138
      %p223 = pneg %p135
      %p224 = scmp.lt.s32.totalorder %s19, 1
      %s225 = scalar_select %p224, %s19, 1
      %p226 = scmp.lt.s32.totalorder %s20, 0
      %s227 = scalar_select %p226, %s20, 0
      %s228 = sadd.s32 %s227, %s225
      %s229 = smul.addr %s228, 4
      %s230 = scalar_lea.vmem %s3, %s229
      %p231 = scmp.lt.s32.totalorder %s20, 0
      %s232 = scalar_select %p231, %s20, 0
      %s233 = smul.addr %s232, 4
      %s234 = scalar_lea.vmem %s0, %s233
      %p235 = scmp.lt.s32.totalorder %s20, 0
      %s236 = scalar_select %p235, %s20, 0
      %s237 = smul.addr %s236, 4
      %s238 = scalar_lea.vmem %s1, %s237
      %s239 = smul.u32 2, %s21
      %p240 = scmp.lt.s32.totalorder %s19, 1
      %s241 = scalar_select %p240, %s19, 1
      %p242 = scmp.lt.s32.totalorder %s20, 0
      %s243 = scalar_select %p242, %s20, 0
      %p244 = scmp.lt.s32.totalorder %s239, 1
      %s245 = scalar_select %p244, %s239, 1
      %s246 = smul.addr %s243, 2
      %s247 = sadd.s32 %s245, %s246
      %s248 = smul.addr %s241, 2
      %s249 = sadd.s32 %s247, %s248
      %s250 = smul.addr %s249, 4
      %s251 = scalar_lea.vmem %s2, %s250
      %s252 = smul.u32 2, %s21
      %p253 = scmp.lt.s32.totalorder %s19, 1
      %s254 = scalar_select %p253, %s19, 1
      %p255 = scmp.lt.s32.totalorder %s20, 0
      %s256 = scalar_select %p255, %s20, 0
      %s257 = sadd.s32 %s256, %s254
      %s258 = smul.addr %s257, 4
      %s259 = scalar_lea.vmem %s3, %s258
      %p260 = scmp.eq.s32.totalorder %s21, 0
      // Predicated region
      $region33: #{tpu_custom_call.1} parent=31 // pred_check
        %p261 = pneg %p260
      $region34: #{tpu_custom_call.1} parent=31 // pred_check_branch
        %263 = sbr.rel (%p261) target = $region36
      $region35: #{tpu_custom_call.1} parent=31 // pred_region
        %264 = vst [vmem:[#allocation2] sm:$0xff] 0.0
      $region36: #{tpu_custom_call.1} parent=31 // pred_fallthru
        _
      %v265 = vld [vmem:[%s251] sm:$0xff]
      %v266 = vmax.f32 %v265, 1e-06
      %v267 = vmul.f32 %v266, %v266
      %v268 = vmul.f32 %v266, %v267
      %v269 = vld [vmem:[#allocation2] sm:$0xff]
      %v270 = vadd.f32 %v269, %v268
      %271 = vst [vmem:[#allocation2] sm:$0xff] %v270
      // Predicated region
      $region37: #{tpu_custom_call.1} parent=31 // pred_check
        %p272 = pneg %p260
      $region38: #{tpu_custom_call.1} parent=31 // pred_check_branch
        %274 = sbr.rel (%p272) target = $region40
      $region39: #{tpu_custom_call.1} parent=31 // pred_region
        %v275 = vld [vmem:[#allocation2] sm:$0xff]
        %v277 = vcombine.high %v275, %v275
        %vm279 = vcmask 1043456
        %v280 = vsel %vm279, %v275, 0.0
        %v281 = vsel %vm279, %v277, 0.0
        %v282 = vadd.f32 %v280, %v281
        %283 = vadd.xlane.f32.xlu0 %v282
        %v284 = vpop.xlane.xlu0 %283
        %v285 = vmul.f32 %v284, 0.00390625
        %v286 = vld [vmem:[%s238] sm:$0xf]
        %v287 = vpow.f32 %v285, %v286
        %vm288 = vcmask 3072
        %289 = vst.msk [vmem:[%s259] sm:$0xf] %vm288, %v287
      $region40: #{tpu_custom_call.1} parent=31 // pred_fallthru
        _
      %p290 = scmp.lt.s32.totalorder %s19, 1
      %s291 = scalar_select %p290, %s19, 1
      %p292 = scmp.lt.s32.totalorder %s20, 0
      %s293 = scalar_select %p292, %s20, 0
      %s294 = sadd.s32 %s293, %s291
      %s295 = smul.addr %s294, 4
      %s296 = scalar_lea.vmem %s3, %s295
      // Predicated region
      $region41: #{tpu_custom_call.1} parent=31 // pred_check
        %p297 = pneg %p135
      $region42: #{tpu_custom_call.1} parent=31 // pred_check_branch
        %299 = sbr.rel (%p297) target = $region44
      $region43: #{tpu_custom_call.1} parent=31 // pred_region
        _
      $region44: #{tpu_custom_call.1} parent=31 // pred_fallthru
        _
    $region32: #{tpu_custom_call.1} parent=5 // pred_fallthru
      _
    %p300 = scmp.le.s32.totalorder 2, %s9
    // Predicated region
    $region45: #{tpu_custom_call.1} parent=5 // pred_check
      %p301 = pneg %p300
    $region46: #{tpu_custom_call.1} parent=5 // pred_check_branch
      %303 = sbr.rel (%p301) target = $region48
    $region47: #{tpu_custom_call.1} parent=5 // pred_region
      %s304 = ssub.s32 %s9, 2
      // Predicated region
      $region49: #{tpu_custom_call.1} parent=47 // pred_check
        %p305 = pneg %p141
      $region50: #{tpu_custom_call.1} parent=47 // pred_check_branch
        %307 = sbr.rel (%p305) target = $region52
      $region51: #{tpu_custom_call.1} parent=47 // pred_region
        %p308 = scmp.lt.s32.totalorder %s22, 1
        %s309 = scalar_select %p308, %s22, 1
        %p310 = scmp.lt.s32.totalorder %s23, 0
        %s311 = scalar_select %p310, %s23, 0
        %s312 = sadd.s32 %s311, %s309
        %s313 = smul.addr %s312, 4
        %s314 = scalar_lea.vmem %s3, %s313
      $region52: #{tpu_custom_call.1} parent=47 // pred_fallthru
        _
    $region48: #{tpu_custom_call.1} parent=5 // pred_fallthru
      _
  $region6: #{tpu_custom_call.1} parent=0 // loop_footer
    %s13 = sadd.s32 1, %s9
  $region7: #{tpu_custom_call.1} parent=0 // loop_footer_branch
    %8 = sbr.rel target = $region3
  $region8: #{tpu_custom_call.1} parent=0 // loop_exit
    _

</llo_original>
